<compile_context>
chip_gen: v6e
topology: v6e:2x2x1
jax: 0.10.0
libtpu: 0.0.40
codegen_flags: <defaults>
</compile_context>

<pallas_src>
import jax
import jax.numpy as jnp
from jax.experimental import pallas as pl
from jax.experimental.pallas import tpu as pltpu

BERT_DIM = 768
FAST_DIM = 1200
CAT_DIM = BERT_DIM + FAST_DIM       # 1968
OUT_DIM = 2


def _head_kernel(xb_ref, xf_ref, wb_ref, wf_ref, b_ref, o_ref):
    # logit_c = sum_l bert[l]*Wb[c,l] + sum_l fast[l]*Wf[c,l] + b[c]
    # One activation row broadcast (in vregs) against the 2 weight rows:
    # a couple of VPU multiplies + XLU lane reductions; no MXU, no padding rows.
    xb = xb_ref[...]                                   # (1, 768)
    xf = xf_ref[...]                                   # (1, 1200)
    pb = xb * wb_ref[...]                              # (2, 768)   VPU
    pf = xf * wf_ref[...]                              # (2, 1200)  VPU
    s = (jnp.sum(pb, axis=-1, keepdims=True)
         + jnp.sum(pf, axis=-1, keepdims=True))        # (2, 1)     XLU lane reduce
    o_ref[...] = s + b_ref[...]                        # bias folded in-kernel


def _head_call(xb, xf, wb, wf, b_col):
    vmem = pl.BlockSpec(memory_space=pltpu.MemorySpace.VMEM)
    return pl.pallas_call(
        _head_kernel,
        out_shape=jax.ShapeDtypeStruct((OUT_DIM, 1), jnp.float32),
        in_specs=[vmem, vmem, vmem, vmem, vmem],
        out_specs=vmem,
    )(xb, xf, wb, wf, b_col)


def init_head_params(W, b):
    """One-time packing of the frozen nn.Linear(1968, 2) parameters.

    W: (2, 1968) f32 (PyTorch layout), b: (2,) f32.
    Split into the bert / fast column blocks and a (2, 1) bias column.
    Hoisted out of the per-call path since the Linear is frozen at inference.
    """
    W = jnp.asarray(W, jnp.float32)
    wb = W[:, :BERT_DIM]                               # (2, 768)
    wf = W[:, BERT_DIM:CAT_DIM]                        # (2, 1200)
    b_col = jnp.asarray(b, jnp.float32).reshape(OUT_DIM, 1)
    return wb, wf, b_col


@jax.jit
def _forward_core(bert_out, fast_out, wb, wf, b_col):
    # Only metadata reshapes in the wrapper; no slab construction, no bias add.
    xb = bert_out.reshape(1, BERT_DIM)
    xf = fast_out.reshape(1, FAST_DIM)
    out_col = _head_call(xb, xf, wb, wf, b_col)        # (2, 1)
    return out_col.reshape(1, OUT_DIM)                 # torch .unsqueeze(0) -> (1, 2)


def sector_fasttext_forward(bert_out, fast_out, params, ls):
    """Mirrors Sector_Fasttext.forward semantics (single example)."""
    wb, wf, b_col = params
    out = _forward_core(bert_out, fast_out, wb, wf, b_col)
    tar = jnp.asarray([ls[2]], dtype=jnp.int32)
    return out, tar


if __name__ == "__main__":
    key = jax.random.PRNGKey(0)
    k1, k2, k3, k4 = jax.random.split(key, 4)

    # Deterministic stand-ins for the frozen sub-model pooled outputs.
    bert_out = jax.random.normal(k1, (BERT_DIM,), jnp.float32)
    fast_out = jax.random.normal(k2, (FAST_DIM,), jnp.float32)

    # Deterministic Linear(1968, 2) parameters (PyTorch-style uniform init).
    fan_in = CAT_DIM
    bound = 1.0 / jnp.sqrt(jnp.float32(fan_in))
    W = jax.random.uniform(k3, (OUT_DIM, fan_in), jnp.float32, -bound, bound)
    b = jax.random.uniform(k4, (OUT_DIM,), jnp.float32, -bound, bound)

    ls = [0, 1, 1, 0]  # ls[2] is the target label, as in the torch module

    params = init_head_params(W, b)  # one-time, hoisted out of per-call path
    out, tar = sector_fasttext_forward(bert_out, fast_out, params, ls)
    out = jax.block_until_ready(out)
    tar = jax.block_until_ready(tar)

    # Reference check (plain JAX) of the concat + linear semantics.
    vec_cat = jnp.concatenate([bert_out, fast_out])
    ref = (W @ vec_cat + b)[None, :]
    assert out.shape == (1, 2) and tar.shape == (1,)
    assert int(tar[0]) == ls[2]
    assert jnp.allclose(out, ref, atol=1e-4, rtol=1e-4), (out, ref)

    print("KERNEL_OK")
</pallas_src>

<mosaic_0001>
module attributes {stable_mosaic.version = 11 : i64} {
  func.func @_head_kernel(%arg0: memref<1x768xf32, #tpu.memory_space<vmem>>, %arg1: memref<1x1200xf32, #tpu.memory_space<vmem>>, %arg2: memref<2x768xf32, #tpu.memory_space<vmem>>, %arg3: memref<2x1200xf32, #tpu.memory_space<vmem>>, %arg4: memref<2x1xf32, #tpu.memory_space<vmem>>, %arg5: memref<2x1xf32, #tpu.memory_space<vmem>>) attributes {dimension_semantics = [], scalar_prefetch = 0 : i64, scratch_operands = 0 : i64, tpu.core_type = #tpu.core_type<tc>} {
    %c0 = arith.constant 0 : index
    %c0_0 = arith.constant 0 : index
    %0 = vector.load %arg0[%c0, %c0_0] : memref<1x768xf32, #tpu.memory_space<vmem>>, vector<1x768xf32>
    %c0_1 = arith.constant 0 : index
    %c0_2 = arith.constant 0 : index
    %1 = vector.load %arg1[%c0_1, %c0_2] : memref<1x1200xf32, #tpu.memory_space<vmem>>, vector<1x1200xf32>
    %c0_3 = arith.constant 0 : index
    %c0_4 = arith.constant 0 : index
    %2 = vector.load %arg2[%c0_3, %c0_4] : memref<2x768xf32, #tpu.memory_space<vmem>>, vector<2x768xf32>
    %3 = vector.broadcast %0 : vector<1x768xf32> to vector<2x768xf32>
    %4 = arith.mulf %3, %2 : vector<2x768xf32>
    %c0_5 = arith.constant 0 : index
    %c0_6 = arith.constant 0 : index
    %5 = vector.load %arg3[%c0_5, %c0_6] : memref<2x1200xf32, #tpu.memory_space<vmem>>, vector<2x1200xf32>
    %6 = vector.broadcast %1 : vector<1x1200xf32> to vector<2x1200xf32>
    %7 = arith.mulf %6, %5 : vector<2x1200xf32>
    %cst = arith.constant dense<0.000000e+00> : vector<2xf32>
    %8 = vector.multi_reduction <add>, %4, %cst [1] : vector<2x768xf32> to vector<2xf32>
    %9 = vector.shape_cast %8 : vector<2xf32> to vector<2x1xf32>
    %cst_7 = arith.constant dense<0.000000e+00> : vector<2xf32>
    %10 = vector.multi_reduction <add>, %7, %cst_7 [1] : vector<2x1200xf32> to vector<2xf32>
    %11 = vector.shape_cast %10 : vector<2xf32> to vector<2x1xf32>
    %12 = arith.addf %9, %11 : vector<2x1xf32>
    %c0_8 = arith.constant 0 : index
    %c0_9 = arith.constant 0 : index
    %13 = vector.load %arg4[%c0_8, %c0_9] : memref<2x1xf32, #tpu.memory_space<vmem>>, vector<2x1xf32>
    %14 = arith.addf %12, %13 : vector<2x1xf32>
    %c0_10 = arith.constant 0 : index
    %c0_11 = arith.constant 0 : index
    %15 = vector.load %arg5[%c0_10, %c0_11] : memref<2x1xf32, #tpu.memory_space<vmem>>, vector<2x1xf32>
    tpu.vector_store %arg5[%c0_10, %c0_11], %14 {strides = array<i32>} : memref<2x1xf32, #tpu.memory_space<vmem>>, vector<2x1xf32>,
    return
  }
}

</mosaic_0001>

<llo_original>
// kernel: _forward_core.1
$region0: #{_forward_core.1}
  #allocation0 [shape = 'u32[]', space=smem, size = 0x4, offset = 0x4, fixed_abs, tag = 'smem constant byte address 0x4 - core index']
  #allocation1 [shape = 'u32[144,128]{1,0:T(1,128)}', space=vmem, size = 0x12000, scoped, tag = 'internal scratch']
  %s0 = inlined_call_operand.vmem [shape: f32[1,768], index: 0, kind: input, shape index: {}]
  %s1 = inlined_call_operand.vmem [shape: f32[1,1200], index: 1, kind: input, shape index: {}]
  %s2 = inlined_call_operand.hbm [shape: f32[2,768], index: 2, kind: input, shape index: {}]
  %s3 = inlined_call_operand.vmem [shape: f32[2,1200], index: 3, kind: input, shape index: {}]
  %s4 = inlined_call_operand.vmem [shape: f32[2,1], index: 4, kind: input, shape index: {}]
  %s5 = inlined_call_operand.vmem [shape: f32[2,1], index: 5, kind: output, shape index: {}]
  %s6 = sld [smem:[#allocation0]]
  $region34: #{_forward_core.1} parent=0
    _
  %s8 = ssub.s32 1, %s6
  %s9 = scalar_select 0, %s8, %s6
  $region1: #{_forward_core.1} parent=0
    #allocation2 [shape = 'u8[6144]{0}', space=vmem, size = 0x1800, scoped, tag = 'input window, operand 2, single buffered']
    #allocation3 [shape = 's32[1]{0}', space=sflag, size = 0x4, scoped, tag = 'scoped memory for _forward_core.1']
    %10 = vsyncpa [#allocation3], 0
    // Predicated region
    $region2: #{_forward_core.1} parent=1 // pred_check
      _
    $region3: #{_forward_core.1} parent=1 // pred_check_branch
      %12 = sbr.rel (0) target = $region5
    $region4: #{_forward_core.1} parent=1 // pred_region
      _
    $region5: #{_forward_core.1} parent=1 // pred_fallthru
      _
    // Predicated region
    $region6: #{_forward_core.1} parent=1 // pred_check
      _
    $region7: #{_forward_core.1} parent=1 // pred_check_branch
      %14 = sbr.rel (0) target = $region9
    $region8: #{_forward_core.1} parent=1 // pred_region
      _
    $region9: #{_forward_core.1} parent=1 // pred_fallthru
      _
    // Predicated region
    $region10: #{_forward_core.1} parent=1 // pred_check
      _
    $region11: #{_forward_core.1} parent=1 // pred_check_branch
      %16 = sbr.rel (0) target = $region13
    $region12: #{_forward_core.1} parent=1 // pred_region
      %s18 = ssub.s32 192, 192
      %19 = vsyncadd [#allocation3], %s18
      %s21 = sshll.u32 [#allocation2], 4
      %s22 = int_to_ptr.vmem [resolvable:$true] %s21
      %24 = dma.hbm_to_vmem [thread:$0]  %s2, 192, %s22, [#allocation3]
    $region13: #{_forward_core.1} parent=1 // pred_fallthru
      _
    // Predicated region
    $region14: #{_forward_core.1} parent=1 // pred_check
      _
    $region15: #{_forward_core.1} parent=1 // pred_check_branch
      %26 = sbr.rel (0) target = $region17
    $region16: #{_forward_core.1} parent=1 // pred_region
      _
    $region17: #{_forward_core.1} parent=1 // pred_fallthru
      _
    // Predicated region
    $region18: #{_forward_core.1} parent=1 // pred_check
      _
    $region19: #{_forward_core.1} parent=1 // pred_check_branch
      %28 = sbr.rel (0) target = $region21
    $region20: #{_forward_core.1} parent=1 // pred_region
      _
    $region21: #{_forward_core.1} parent=1 // pred_fallthru
      _
    // Predicated region
    $region22: #{_forward_core.1} parent=1 // pred_check
      _
    $region23: #{_forward_core.1} parent=1 // pred_check_branch
      %30 = sbr.rel (0) target = $region25
    $region24: #{_forward_core.1} parent=1 // pred_region
      %31 = dma.done [#allocation3], 192
    $region25: #{_forward_core.1} parent=1 // pred_fallthru
      _
    %v32 = vld [vmem:[%s0] sm:$0x3f]
    %v33 = vld [vmem:[%s1] sm:$0xff]
    %v34 = vld [vmem:[%s1 + $0x8] sm:$0x3]
    %v35 = vld [vmem:[#allocation2] sm:$0xff]
    %v36 = vld [vmem:[#allocation2 + $0x8] sm:$0xf]
    %v38 = vlaneseq
    %v39 = vshrl.u32 %v38, 7
    %v40 = vsub.s32 0, %v39
    %v41 = vrot.slane %v32, %v40
    %v42 = vlaneseq
    %v43 = vshrl.u32 %v42, 7
    %v44 = vsub.s32 1, %v43
    %v45 = vrot.slane %v32, %v44
    %v46 = vlaneseq
    %v47 = vshrl.u32 %v46, 7
    %v48 = vsub.s32 2, %v47
    %v49 = vrot.slane %v32, %v48
    %v50 = vlaneseq
    %v51 = vshrl.u32 %v50, 7
    %v52 = vsub.s32 3, %v51
    %v53 = vrot.slane %v32, %v52
    %v54 = vlaneseq
    %v55 = vshrl.u32 %v54, 7
    %v56 = vsub.s32 4, %v55
    %v57 = vrot.slane %v32, %v56
    %v58 = vlaneseq
    %v59 = vshrl.u32 %v58, 7
    %v60 = vsub.s32 5, %v59
    %v61 = vrot.slane %v32, %v60
    %v70 = vcombine.high %v35, %v35
    %v72 = vunpack.c.l.s4 1983009808
    %v73 = vunpack.c.0.s8 %v72
    %v74 = vlaneseq
    %v75 = vshrl.u32 %v74, 7
    %v76 = vsub.s32 %v73, %v75
    %v77 = vrot.slane %v35, %v76
    %v79 = vunpack.c.l.s4 1983009808
    %v80 = vunpack.c.0.s8 %v79
    %v81 = vlaneseq
    %v82 = vshrl.u32 %v81, 7
    %v83 = vsub.s32 %v80, %v82
    %v84 = vrot.slane %v70, %v83
    %v85 = vcombine.high %v77, %v77
    %v86 = vcombine.high %v84, %v84
    %v88 = vunpack.c.l.s4 1983009808
    %v89 = vunpack.c.0.s8 %v88
    %v90 = vlaneseq
    %v91 = vshrl.u32 %v90, 7
    %v92 = vsub.s32 %v89, %v91
    %v93 = vrot.slane %v36, %v92
    %v94 = vcombine.high %v93, %v93
    %v101 = vmul.f32 %v41, %v77
    %v102 = vmul.f32 %v45, %v85
    %v103 = vmul.f32 %v49, %v84
    %v104 = vmul.f32 %v53, %v86
    %v105 = vmul.f32 %v57, %v93
    %v106 = vmul.f32 %v61, %v94
    %v107 = vld [vmem:[%s3] sm:$0xff]
    %v108 = vld [vmem:[%s3 + $0x8] sm:$0xff]
    %v109 = vld [vmem:[%s3 + $0x10] sm:$0xf]
    %v112 = vlaneseq
    %v113 = vshrl.u32 %v112, 7
    %v114 = vsub.s32 0, %v113
    %v115 = vrot.slane %v33, %v114
    %v116 = vlaneseq
    %v117 = vshrl.u32 %v116, 7
    %v118 = vsub.s32 1, %v117
    %v119 = vrot.slane %v33, %v118
    %v120 = vlaneseq
    %v121 = vshrl.u32 %v120, 7
    %v122 = vsub.s32 2, %v121
    %v123 = vrot.slane %v33, %v122
    %v124 = vlaneseq
    %v125 = vshrl.u32 %v124, 7
    %v126 = vsub.s32 3, %v125
    %v127 = vrot.slane %v33, %v126
    %v128 = vlaneseq
    %v129 = vshrl.u32 %v128, 7
    %v130 = vsub.s32 4, %v129
    %v131 = vrot.slane %v33, %v130
    %v132 = vlaneseq
    %v133 = vshrl.u32 %v132, 7
    %v134 = vsub.s32 5, %v133
    %v135 = vrot.slane %v33, %v134
    %v136 = vlaneseq
    %v137 = vshrl.u32 %v136, 7
    %v138 = vsub.s32 6, %v137
    %v139 = vrot.slane %v33, %v138
    %v140 = vlaneseq
    %v141 = vshrl.u32 %v140, 7
    %v142 = vsub.s32 7, %v141
    %v143 = vrot.slane %v33, %v142
    %v144 = vlaneseq
    %v145 = vshrl.u32 %v144, 7
    %v146 = vsub.s32 0, %v145
    %v147 = vrot.slane %v34, %v146
    %v148 = vlaneseq
    %v149 = vshrl.u32 %v148, 7
    %v150 = vsub.s32 1, %v149
    %v151 = vrot.slane %v34, %v150
    %v165 = vcombine.high %v107, %v107
    %v167 = vunpack.c.l.s4 1983009808
    %v168 = vunpack.c.0.s8 %v167
    %v169 = vlaneseq
    %v170 = vshrl.u32 %v169, 7
    %v171 = vsub.s32 %v168, %v170
    %v172 = vrot.slane %v107, %v171
    %v174 = vunpack.c.l.s4 1983009808
    %v175 = vunpack.c.0.s8 %v174
    %v176 = vlaneseq
    %v177 = vshrl.u32 %v176, 7
    %v178 = vsub.s32 %v175, %v177
    %v179 = vrot.slane %v165, %v178
    %v180 = vcombine.high %v172, %v172
    %v181 = vcombine.high %v179, %v179
    %v182 = vcombine.high %v108, %v108
    %v184 = vunpack.c.l.s4 1983009808
    %v185 = vunpack.c.0.s8 %v184
    %v186 = vlaneseq
    %v187 = vshrl.u32 %v186, 7
    %v188 = vsub.s32 %v185, %v187
    %v189 = vrot.slane %v108, %v188
    %v191 = vunpack.c.l.s4 1983009808
    %v192 = vunpack.c.0.s8 %v191
    %v193 = vlaneseq
    %v194 = vshrl.u32 %v193, 7
    %v195 = vsub.s32 %v192, %v194
    %v196 = vrot.slane %v182, %v195
    %v197 = vcombine.high %v189, %v189
    %v198 = vcombine.high %v196, %v196
    %v200 = vunpack.c.l.s4 1983009808
    %v201 = vunpack.c.0.s8 %v200
    %v202 = vlaneseq
    %v203 = vshrl.u32 %v202, 7
    %v204 = vsub.s32 %v201, %v203
    %v205 = vrot.slane %v109, %v204
    %v206 = vcombine.high %v205, %v205
    %v217 = vmul.f32 %v115, %v172
    %v218 = vmul.f32 %v119, %v180
    %v219 = vmul.f32 %v123, %v179
    %v220 = vmul.f32 %v127, %v181
    %v221 = vmul.f32 %v131, %v189
    %v222 = vmul.f32 %v135, %v197
    %v223 = vmul.f32 %v139, %v196
    %v224 = vmul.f32 %v143, %v198
    %v225 = vmul.f32 %v147, %v205
    %v226 = vmul.f32 %v151, %v206
    %vm227 = vcmask 1041408
    %v228 = vsel %vm227, %v101, 0.0
    %v229 = vsel %vm227, %v102, 0.0
    %v230 = vadd.f32 %v228, %v229
    %v231 = vsel %vm227, %v103, 0.0
    %v232 = vadd.f32 %v230, %v231
    %v233 = vsel %vm227, %v104, 0.0
    %v234 = vadd.f32 %v232, %v233
    %v235 = vsel %vm227, %v105, 0.0
    %v236 = vadd.f32 %v234, %v235
    %v237 = vsel %vm227, %v106, 0.0
    %v238 = vadd.f32 %v236, %v237
    %239 = vadd.xlane.f32.xlu0 %v238
    %v240 = vpop.xlane.xlu0 %239
    %v241 = vsel %vm227, %v217, 0.0
    %v242 = vsel %vm227, %v218, 0.0
    %v243 = vadd.f32 %v241, %v242
    %v244 = vsel %vm227, %v219, 0.0
    %v245 = vadd.f32 %v243, %v244
    %v246 = vsel %vm227, %v220, 0.0
    %v247 = vadd.f32 %v245, %v246
    %v248 = vsel %vm227, %v221, 0.0
    %v249 = vadd.f32 %v247, %v248
    %v250 = vsel %vm227, %v222, 0.0
    %v251 = vadd.f32 %v249, %v250
    %v252 = vsel %vm227, %v223, 0.0
    %v253 = vadd.f32 %v251, %v252
    %v254 = vsel %vm227, %v224, 0.0
    %v255 = vadd.f32 %v253, %v254
    %v256 = vsel %vm227, %v225, 0.0
    %v257 = vadd.f32 %v255, %v256
    %vm258 = vcmask 386048
    %v259 = vsel %vm258, %v226, 0.0
    %v260 = vadd.f32 %v257, %v259
    %261 = vadd.xlane.f32.xlu0 %v260
    %v262 = vpop.xlane.xlu0 %261
    %v263 = vadd.f32 %v240, %v262
    %v264 = vld [vmem:[%s4] sm:$0x3]
    %v265 = vadd.f32 %v263, %v264
    %vm266 = vcmask 1024
    %267 = vst.msk [vmem:[%s5] sm:$0x3] %vm266, %v265
    // Predicated region
    $region26: #{_forward_core.1} parent=1 // pred_check
      _
    $region27: #{_forward_core.1} parent=1 // pred_check_branch
      %269 = sbr.rel (0) target = $region29
    $region28: #{_forward_core.1} parent=1 // pred_region
      _
    $region29: #{_forward_core.1} parent=1 // pred_fallthru
      _
    // Predicated region
    $region30: #{_forward_core.1} parent=1 // pred_check
      _
    $region31: #{_forward_core.1} parent=1 // pred_check_branch
      %271 = sbr.rel (0) target = $region33
    $region32: #{_forward_core.1} parent=1 // pred_region
      _
    $region33: #{_forward_core.1} parent=1 // pred_fallthru
      _
    %272 = vsyncpa [#allocation3], 1

</llo_original>
